<compile_context>
chip_gen: v7x
topology: tpu7x:2x2x1
jax: 0.10.0
libtpu: 0.0.40
codegen_flags: <defaults>
</compile_context>

<pallas_src>
import jax
import jax.numpy as jnp
from jax.experimental import pallas as pl
from jax.experimental.pallas import tpu as pltpu

BN_EPS = 1e-5
LANE = 128


def expert_kernel(x_ref, w_ref, b_ref, gamma_ref, beta_ref, o_ref):
    # x_ref:     (N, D_in)   -- resident across the whole grid
    # w_ref:     (TN, D_in)  -- tile of the PyTorch-layout (out, in) weight
    # b_ref:     (1, TN)
    # gamma_ref: (1, TN)
    # beta_ref:  (1, TN)
    # o_ref:     (N, TN)
    x = x_ref[...]
    w = w_ref[...]

    # Linear: x @ W^T + b on the MXU; contract the last dims of both operands
    # so the weight is used in its native (out, in) layout (no transpose).
    h = jax.lax.dot_general(
        x, w, (((1,), (1,)), ((), ())), preferred_element_type=jnp.float32)
    h = h + b_ref[...].astype(jnp.float32)

    # QuickGELU: h * sigmoid(1.702 * h)   (VPU + EUP)
    a = h * jax.nn.sigmoid(1.702 * h)

    # BatchNorm1d (training mode): stats over the full batch (N untiled),
    # biased variance, affine fused into one per-feature scale/shift.
    mean = jnp.mean(a, axis=0, keepdims=True)
    var = jnp.mean((a - mean) ** 2, axis=0, keepdims=True)
    scale = gamma_ref[...].astype(jnp.float32) * jax.lax.rsqrt(var + BN_EPS)
    shift = beta_ref[...].astype(jnp.float32) - mean * scale

    o_ref[...] = (a * scale + shift).astype(o_ref.dtype)


def _pick_feature_tile(d_padded):
    # Prefer 512/256 (good for v6e/v7x 256-wide MXU), fall back to 128 (v5e
    # MXU width and the minimum lane-dense tile).  d_padded is a multiple of
    # 128, so this always returns a divisor of d_padded.
    for tn in (512, 256, 128):
        if d_padded % tn == 0:
            return tn
    return d_padded


def expert_forward(x, w, b, gamma, beta):
    """x: (N, D_in), w: (D_out, D_in) PyTorch-style, b/gamma/beta: (D_out,)."""
    N, D_in = x.shape
    D_out = w.shape[0]

    # Pad the output-feature dim to a lane-dense multiple of 128.  Padded
    # columns produce exact zeros (zero weight rows / bias / gamma / beta) and
    # are sliced away afterwards.
    D_pad = ((D_out + LANE - 1) // LANE) * LANE
    pad = D_pad - D_out
    if pad:
        w = jnp.pad(w, ((0, pad), (0, 0)))
        b = jnp.pad(b, (0, pad))
        gamma = jnp.pad(gamma, (0, pad))
        beta = jnp.pad(beta, (0, pad))
    b2 = b.reshape(1, D_pad)
    g2 = gamma.reshape(1, D_pad)
    be2 = beta.reshape(1, D_pad)

    TN = _pick_feature_tile(D_pad)
    grid = (D_pad // TN,)

    # VMEM budget: resident x + double-buffered weight tile + double-buffered
    # output tile + per-feature params + headroom.  Capped at 64 MiB so it is
    # portable to v7x's smaller VMEM.
    itemsize = jnp.dtype(x.dtype).itemsize
    w_itemsize = jnp.dtype(w.dtype).itemsize
    vmem_needed = (N * D_in * itemsize
                   + 2 * TN * D_in * w_itemsize
                   + 2 * N * TN * itemsize
                   + 2 * 3 * TN * 4
                   + (4 << 20))
    vmem_limit = int(min(max(vmem_needed, 32 << 20), 64 << 20))

    # TODO(synk): for very large N the full batch must still fit in VMEM for
    # the axis-0 BN reduction; a two-pass (sum / sum-of-squares) variant with
    # an "arbitrary" N grid axis would lift that ceiling.
    out = pl.pallas_call(
        expert_kernel,
        out_shape=jax.ShapeDtypeStruct((N, D_pad), x.dtype),
        grid=grid,
        in_specs=[
            pl.BlockSpec((N, D_in), lambda j: (0, 0)),   # x resident
            pl.BlockSpec((TN, D_in), lambda j: (j, 0)),  # weight tile (out, in)
            pl.BlockSpec((1, TN), lambda j: (0, j)),     # bias tile
            pl.BlockSpec((1, TN), lambda j: (0, j)),     # gamma tile
            pl.BlockSpec((1, TN), lambda j: (0, j)),     # beta tile
        ],
        out_specs=pl.BlockSpec((N, TN), lambda j: (0, j)),
        compiler_params=pltpu.CompilerParams(
            dimension_semantics=("parallel",),
            vmem_limit_bytes=vmem_limit),
    )(x, w, b2, g2, be2)

    return out[:, :D_out] if pad else out


def expert_reference(x, w, b, gamma, beta):
    h = x @ w.T + b
    a = h * jax.nn.sigmoid(1.702 * h)
    mean = jnp.mean(a, axis=0, keepdims=True)
    var = jnp.mean((a - mean) ** 2, axis=0, keepdims=True)
    return (a - mean) / jnp.sqrt(var + BN_EPS) * gamma + beta


def _run_case(key, N, D):
    kx, kw, kb, kg, kbe = jax.random.split(key, 5)
    x = jax.random.normal(kx, (N, D), dtype=jnp.float32)
    bound = 1.0 / jnp.sqrt(D)
    w = jax.random.uniform(kw, (D, D), minval=-bound, maxval=bound,
                           dtype=jnp.float32)
    b = jax.random.uniform(kb, (D,), minval=-bound, maxval=bound,
                           dtype=jnp.float32)
    gamma = 1.0 + 0.1 * jax.random.normal(kg, (D,), dtype=jnp.float32)
    beta = 0.1 * jax.random.normal(kbe, (D,), dtype=jnp.float32)

    out = jax.block_until_ready(expert_forward(x, w, b, gamma, beta))
    ref = expert_reference(x, w, b, gamma, beta)
    assert out.shape == (N, D)
    assert jnp.allclose(out, ref, atol=1e-4, rtol=1e-4), \
        f"mismatch vs reference at shape ({N},{D})"


if __name__ == "__main__":
    key = jax.random.PRNGKey(0)
    k1, k2 = jax.random.split(key)

    # Small shape matching the module's natural input (batch=8, input_dim=32):
    # exercises the lane-padding path (32 -> 128).
    _run_case(k1, N=8, D=32)

    # Multi-tile grid path (D already lane-dense, 3 feature tiles of 128).
    _run_case(k2, N=16, D=384)

    print("KERNEL_OK")
</pallas_src>

<mosaic_0001>
module attributes {stable_mosaic.version = 11 : i64} {
  func.func @expert_kernel(%arg0: i32, %arg1: memref<8x32xf32, #tpu.memory_space<vmem>>, %arg2: memref<128x32xf32, #tpu.memory_space<vmem>>, %arg3: memref<1x128xf32, #tpu.memory_space<vmem>>, %arg4: memref<1x128xf32, #tpu.memory_space<vmem>>, %arg5: memref<1x128xf32, #tpu.memory_space<vmem>>, %arg6: memref<8x128xf32, #tpu.memory_space<vmem>>) attributes {dimension_semantics = [#tpu.dimension_semantics<parallel>], iteration_bounds = array<i64: 1>, scalar_prefetch = 0 : i64, scratch_operands = 0 : i64, tpu.core_type = #tpu.core_type<tc>, window_params = [{pipeline_mode = #tpu.pipeline_mode<synchronous>, transform_indices = @transform_0, window_bounds = array<i64: 8, 32>}, {transform_indices = @transform_1, window_bounds = array<i64: 128, 32>}, {transform_indices = @transform_2, window_bounds = array<i64: 1, 128>}, {transform_indices = @transform_3, window_bounds = array<i64: 1, 128>}, {transform_indices = @transform_4, window_bounds = array<i64: 1, 128>}, {transform_indices = @transform_5, window_bounds = array<i64: 8, 128>}]} {
    %c0 = arith.constant 0 : index
    %c0_0 = arith.constant 0 : index
    %0 = vector.load %arg1[%c0, %c0_0] : memref<8x32xf32, #tpu.memory_space<vmem>>, vector<8x32xf32>
    %c0_1 = arith.constant 0 : index
    %c0_2 = arith.constant 0 : index
    %1 = vector.load %arg2[%c0_1, %c0_2] : memref<128x32xf32, #tpu.memory_space<vmem>>, vector<128x32xf32>
    %cst = arith.constant dense<0.000000e+00> : vector<8x128xf32>
    %2 = tpu.matmul %0, %1, %cst {dimension_numbers = #tpu.dot_dimension_numbers<[1], [1], [0], [0], [0, 0, 1, 0], [], []>} : vector<8x32xf32>, vector<128x32xf32>, vector<8x128xf32> -> vector<8x128xf32>
    %c0_3 = arith.constant 0 : index
    %c0_4 = arith.constant 0 : index
    %3 = vector.load %arg3[%c0_3, %c0_4] : memref<1x128xf32, #tpu.memory_space<vmem>>, vector<1x128xf32>
    %4 = vector.broadcast %3 : vector<1x128xf32> to vector<8x128xf32>
    %5 = arith.addf %2, %4 : vector<8x128xf32>
    %cst_5 = arith.constant 1.702000e+00 : f32
    %6 = vector.broadcast %cst_5 : f32 to vector<8x128xf32>
    %7 = arith.mulf %6, %5 : vector<8x128xf32>
    %8 = arith.negf %7 : vector<8x128xf32>
    %9 = math.exp %8 : vector<8x128xf32>
    %cst_6 = arith.constant 1.000000e+00 : f32
    %10 = vector.broadcast %cst_6 : f32 to vector<8x128xf32>
    %11 = arith.addf %10, %9 : vector<8x128xf32>
    %12 = arith.divf %10, %11 : vector<8x128xf32>
    %13 = arith.mulf %5, %12 : vector<8x128xf32>
    %cst_7 = arith.constant dense<0.000000e+00> : vector<128xf32>
    %14 = vector.multi_reduction <add>, %13, %cst_7 [0] : vector<8x128xf32> to vector<128xf32>
    %15 = vector.shape_cast %14 : vector<128xf32> to vector<1x128xf32>
    %cst_8 = arith.constant 8.000000e+00 : f32
    %16 = vector.broadcast %cst_8 : f32 to vector<1x128xf32>
    %17 = arith.divf %15, %16 : vector<1x128xf32>
    %18 = vector.broadcast %17 : vector<1x128xf32> to vector<8x128xf32>
    %19 = arith.subf %13, %18 : vector<8x128xf32>
    %20 = arith.mulf %19, %19 : vector<8x128xf32>
    %cst_9 = arith.constant dense<0.000000e+00> : vector<128xf32>
    %21 = vector.multi_reduction <add>, %20, %cst_9 [0] : vector<8x128xf32> to vector<128xf32>
    %22 = vector.shape_cast %21 : vector<128xf32> to vector<1x128xf32>
    %cst_10 = arith.constant 8.000000e+00 : f32
    %23 = vector.broadcast %cst_10 : f32 to vector<1x128xf32>
    %24 = arith.divf %22, %23 : vector<1x128xf32>
    %c0_11 = arith.constant 0 : index
    %c0_12 = arith.constant 0 : index
    %25 = vector.load %arg4[%c0_11, %c0_12] : memref<1x128xf32, #tpu.memory_space<vmem>>, vector<1x128xf32>
    %cst_13 = arith.constant 9.99999974E-6 : f32
    %26 = vector.broadcast %cst_13 : f32 to vector<1x128xf32>
    %27 = arith.addf %24, %26 : vector<1x128xf32>
    %28 = math.rsqrt %27 : vector<1x128xf32>
    %29 = arith.mulf %25, %28 : vector<1x128xf32>
    %c0_14 = arith.constant 0 : index
    %c0_15 = arith.constant 0 : index
    %30 = vector.load %arg5[%c0_14, %c0_15] : memref<1x128xf32, #tpu.memory_space<vmem>>, vector<1x128xf32>
    %31 = arith.mulf %17, %29 : vector<1x128xf32>
    %32 = arith.subf %30, %31 : vector<1x128xf32>
    %33 = vector.broadcast %29 : vector<1x128xf32> to vector<8x128xf32>
    %34 = arith.mulf %13, %33 : vector<8x128xf32>
    %35 = vector.broadcast %32 : vector<1x128xf32> to vector<8x128xf32>
    %36 = arith.addf %34, %35 : vector<8x128xf32>
    %c0_16 = arith.constant 0 : index
    %c0_17 = arith.constant 0 : index
    %37 = vector.load %arg6[%c0_16, %c0_17] : memref<8x128xf32, #tpu.memory_space<vmem>>, vector<8x128xf32>
    tpu.vector_store %arg6[%c0_16, %c0_17], %36 {strides = array<i32>} : memref<8x128xf32, #tpu.memory_space<vmem>>, vector<8x128xf32>,
    return
  }
  func.func @transform_0(%arg0: i32) -> (i32, i32) {
    %c0_i32 = arith.constant 0 : i32
    %c0_i32_0 = arith.constant 0 : i32
    %c0_i32_1 = arith.constant 0 : i32
    return %c0_i32, %c0_i32_0 : i32, i32
  }
  func.func @transform_1(%arg0: i32) -> (i32, i32) {
    %c0_i32 = arith.constant 0 : i32
    %c0_i32_0 = arith.constant 0 : i32
    return %arg0, %c0_i32 : i32, i32
  }
  func.func @transform_2(%arg0: i32) -> (i32, i32) {
    %c0_i32 = arith.constant 0 : i32
    %c0_i32_0 = arith.constant 0 : i32
    return %c0_i32, %arg0 : i32, i32
  }
  func.func @transform_3(%arg0: i32) -> (i32, i32) {
    %c0_i32 = arith.constant 0 : i32
    %c0_i32_0 = arith.constant 0 : i32
    return %c0_i32, %arg0 : i32, i32
  }
  func.func @transform_4(%arg0: i32) -> (i32, i32) {
    %c0_i32 = arith.constant 0 : i32
    %c0_i32_0 = arith.constant 0 : i32
    return %c0_i32, %arg0 : i32, i32
  }
  func.func @transform_5(%arg0: i32) -> (i32, i32) {
    %c0_i32 = arith.constant 0 : i32
    %c0_i32_0 = arith.constant 0 : i32
    return %c0_i32, %arg0 : i32, i32
  }
}

</mosaic_0001>

<llo_original>
// kernel: tpu_custom_call.1
$region0: #{tpu_custom_call.1}
  #allocation0 [shape = 'u32[]', space=smem, size = 0x4, offset = 0x4, fixed_abs, tag = 'smem constant byte address 0x4 - core index']
  #allocation1 [shape = 'u32[144,128]{1,0:T(1,128)}', space=vmem, size = 0x12000, scoped, tag = 'internal scratch']
  %s0 = inlined_call_operand.vmem [shape: f32[8,32], index: 0, kind: input, shape index: {}]
  %s1 = inlined_call_operand.vmem [shape: f32[128,32], index: 1, kind: input, shape index: {}]
  %s2 = inlined_call_operand.vmem [shape: f32[1,128], index: 2, kind: input, shape index: {}]
  %s3 = inlined_call_operand.vmem [shape: f32[1,128], index: 3, kind: input, shape index: {}]
  %s4 = inlined_call_operand.vmem [shape: f32[1,128], index: 4, kind: input, shape index: {}]
  %s5 = inlined_call_operand.hbm [shape: f32[8,128], index: 5, kind: output, shape index: {}]
  %s6 = sld [smem:[#allocation0]]
  $region30: #{tpu_custom_call.1} parent=0
    _
  %s8 = ssub.s32 1, %s6
  %s9 = scalar_select 0, %s8, %s6
  $region1: #{tpu_custom_call.1} parent=0
    #allocation2 [shape = 'u8[4096]{0}', space=vmem, size = 0x1000, scoped, tag = 'output window, operand 0, single buffered']
    #allocation3 [shape = 's32[1]{0}', space=sflag, size = 0x4, scoped, tag = 'scoped memory for tpu_custom_call.1']
    %10 = vsyncpa [#allocation3], 0
    // Predicated region
    $region2: #{tpu_custom_call.1} parent=1 // pred_check
      _
    $region3: #{tpu_custom_call.1} parent=1 // pred_check_branch
      %12 = sbr.rel (0) target = $region5
    $region4: #{tpu_custom_call.1} parent=1 // pred_region
      _
    $region5: #{tpu_custom_call.1} parent=1 // pred_fallthru
      _
    // Predicated region
    $region6: #{tpu_custom_call.1} parent=1 // pred_check
      _
    $region7: #{tpu_custom_call.1} parent=1 // pred_check_branch
      %14 = sbr.rel (0) target = $region9
    $region8: #{tpu_custom_call.1} parent=1 // pred_region
      _
    $region9: #{tpu_custom_call.1} parent=1 // pred_fallthru
      _
    // Predicated region
    $region10: #{tpu_custom_call.1} parent=1 // pred_check
      _
    $region11: #{tpu_custom_call.1} parent=1 // pred_check_branch
      %16 = sbr.rel (0) target = $region13
    $region12: #{tpu_custom_call.1} parent=1 // pred_region
      _
    $region13: #{tpu_custom_call.1} parent=1 // pred_fallthru
      _
    // Predicated region
    $region14: #{tpu_custom_call.1} parent=1 // pred_check
      _
    $region15: #{tpu_custom_call.1} parent=1 // pred_check_branch
      %18 = sbr.rel (0) target = $region17
    $region16: #{tpu_custom_call.1} parent=1 // pred_region
      _
    $region17: #{tpu_custom_call.1} parent=1 // pred_fallthru
      _
    // Predicated region
    $region18: #{tpu_custom_call.1} parent=1 // pred_check
      _
    $region19: #{tpu_custom_call.1} parent=1 // pred_check_branch
      %20 = sbr.rel (0) target = $region21
    $region20: #{tpu_custom_call.1} parent=1 // pred_region
      _
    $region21: #{tpu_custom_call.1} parent=1 // pred_fallthru
      _
    %v21 = vld [vmem:[%s0] sm:$0xff]
    %v22 = vld [vmem:[%s1] sm:$0xff]
    %v23 = vld [vmem:[%s1 + $0x8] sm:$0xff]
    %v24 = vld [vmem:[%s1 + $0x10] sm:$0xff]
    %v25 = vld [vmem:[%s1 + $0x18] sm:$0xff]
    %v26 = vld [vmem:[%s1 + $0x20] sm:$0xff]
    %v27 = vld [vmem:[%s1 + $0x28] sm:$0xff]
    %v28 = vld [vmem:[%s1 + $0x30] sm:$0xff]
    %v29 = vld [vmem:[%s1 + $0x38] sm:$0xff]
    %v30 = vld [vmem:[%s1 + $0x40] sm:$0xff]
    %v31 = vld [vmem:[%s1 + $0x48] sm:$0xff]
    %v32 = vld [vmem:[%s1 + $0x50] sm:$0xff]
    %v33 = vld [vmem:[%s1 + $0x58] sm:$0xff]
    %v34 = vld [vmem:[%s1 + $0x60] sm:$0xff]
    %v35 = vld [vmem:[%s1 + $0x68] sm:$0xff]
    %v36 = vld [vmem:[%s1 + $0x70] sm:$0xff]
    %v37 = vld [vmem:[%s1 + $0x78] sm:$0xff]
    %v38 = vld [vmem:[%s2] sm:$0x1]
    %v40 = vlaneseq
    %v41 = vshrl.u32 %v40, 7
    %v42 = vsub.s32 0, %v41
    %v43 = vrot.slane %v38, %v42
    %vm45 = vcmask 261120
    %v47 = vsel %vm45, %v21, 0
    %v50 = vsel %vm45, %v22, 0
    %v53 = vsel %vm45, %v23, 0
    %v56 = vsel %vm45, %v24, 0
    %v59 = vsel %vm45, %v25, 0
    %v62 = vsel %vm45, %v26, 0
    %v65 = vsel %vm45, %v27, 0
    %v68 = vsel %vm45, %v28, 0
    %v71 = vsel %vm45, %v29, 0
    %v74 = vsel %vm45, %v30, 0
    %v77 = vsel %vm45, %v31, 0
    %v80 = vsel %vm45, %v32, 0
    %v83 = vsel %vm45, %v33, 0
    %v86 = vsel %vm45, %v34, 0
    %v89 = vsel %vm45, %v35, 0
    %v92 = vsel %vm45, %v36, 0
    %v95 = vsel %vm45, %v37, 0
    %97 = vmatprep.subr.mxu0 0.0
    %98 = vmatpush1.xpose.msra.mxu0 %v50
    %99 = vmatprep.subr.mxu0 0.0
    %100 = vmatpush1.xpose.msra.mxu0 %v53
    %101 = vmatprep.subr.mxu0 0.0
    %102 = vmatpush1.xpose.msra.mxu0 %v56
    %103 = vmatprep.subr.mxu0 0.0
    %104 = vmatpush1.xpose.msra.mxu0 %v59
    %105 = vmatprep.subr.mxu0 0.0
    %106 = vmatpush1.xpose.msra.mxu0 %v62
    %107 = vmatprep.subr.mxu0 0.0
    %108 = vmatpush1.xpose.msra.mxu0 %v65
    %109 = vmatprep.subr.mxu0 0.0
    %110 = vmatpush1.xpose.msra.mxu0 %v68
    %111 = vmatprep.subr.mxu0 0.0
    %112 = vmatpush1.xpose.msra.mxu0 %v71
    %113 = vmatprep.subr.mxu0 0.0
    %114 = vmatpush1.xpose.msra.mxu0 %v74
    %115 = vmatprep.subr.mxu0 0.0
    %116 = vmatpush1.xpose.msra.mxu0 %v77
    %117 = vmatprep.subr.mxu0 0.0
    %118 = vmatpush1.xpose.msra.mxu0 %v80
    %119 = vmatprep.subr.mxu0 0.0
    %120 = vmatpush1.xpose.msra.mxu0 %v83
    %121 = vmatprep.subr.mxu0 0.0
    %122 = vmatpush1.xpose.msra.mxu0 %v86
    %123 = vmatprep.subr.mxu0 0.0
    %124 = vmatpush1.xpose.msra.mxu0 %v89
    %125 = vmatprep.subr.mxu0 0.0
    %126 = vmatpush1.xpose.msra.mxu0 %v92
    %127 = vmatprep.subr.mxu0 0.0
    %128 = vmatpush1.xpose.msra.mxu0 %v95
    %129 = vmatprep.subr.mxu0 0.0
    %130 = vmatpush1.xpose.msra.mxu0 0.0
    %131 = vmatprep.subr.mxu0 0.0
    %132 = vmatpush1.xpose.msra.mxu0 0.0
    %133 = vmatprep.subr.mxu0 0.0
    %134 = vmatpush1.xpose.msra.mxu0 0.0
    %135 = vmatprep.subr.mxu0 0.0
    %136 = vmatpush1.xpose.msra.mxu0 0.0
    %137 = vmatprep.subr.mxu0 0.0
    %138 = vmatpush1.xpose.msra.mxu0 0.0
    %139 = vmatprep.subr.mxu0 0.0
    %140 = vmatpush1.xpose.msra.mxu0 0.0
    %141 = vmatprep.subr.mxu0 0.0
    %142 = vmatpush1.xpose.msra.mxu0 0.0
    %143 = vmatprep.subr.mxu0 0.0
    %144 = vmatpush1.xpose.msra.mxu0 0.0
    %145 = vmatprep.subr.mxu0 0.0
    %146 = vmatpush1.xpose.msra.mxu0 0.0
    %147 = vmatprep.subr.mxu0 0.0
    %148 = vmatpush1.xpose.msra.mxu0 0.0
    %149 = vmatprep.subr.mxu0 0.0
    %150 = vmatpush1.xpose.msra.mxu0 0.0
    %151 = vmatprep.subr.mxu0 0.0
    %152 = vmatpush1.xpose.msra.mxu0 0.0
    %153 = vmatprep.subr.mxu0 0.0
    %154 = vmatpush1.xpose.msra.mxu0 0.0
    %155 = vmatprep.subr.mxu0 0.0
    %156 = vmatpush1.xpose.msra.mxu0 0.0
    %157 = vmatprep.subr.mxu0 0.0
    %158 = vmatpush1.xpose.msra.mxu0 0.0
    %159 = vmatprep.subr.mxu0 0.0
    %160 = vmatpush1.xpose.msra.mxu0 0.0
    %161 = vmatprep.mubr.f32.mxu0 0.0
    %162 = vmatmul.mubr.f32.gmra.mrb[0].mxu0 %v47
    %v163 = vpop.f32.mrb[0].mxu0
    %v164 = vadd.f32 %v43, %v163
    %v165 = vpop.f32.mrb[0].mxu0
    %166 = vdwg.mxu0
    %v167 = vmul.f32 %v164, 1.702
    %v168 = vxor.u32 %v167, 2147483648
    %v169 = vmul.f32 %v168, 1.442695
    %v170 = vpow.pop %v169
    %v171 = vadd.f32 %v170, 1.0
    %v172 = vrcp.pop %v171
    %v173 = vmul.f32 1.0, %v172
    %v174 = vmul.f32 %v164, %v173
    %v175 = vrot.slane %v174, 4
    %v176 = vadd.f32 %v174, %v175
    %v177 = vrot.slane %v176, 2
    %v178 = vadd.f32 %v176, %v177
    %v179 = vrot.slane %v178, 1
    %v180 = vadd.f32 %v178, %v179
    %v181 = vrcp.pop 8.0
    %v182 = vmul.f32 %v180, %v181
    %v183 = vsub.f32 %v174, %v182
    %v184 = vmul.f32 %v183, %v183
    %v185 = vrot.slane %v184, 4
    %v186 = vadd.f32 %v184, %v185
    %v187 = vrot.slane %v186, 2
    %v188 = vadd.f32 %v186, %v187
    %v189 = vrot.slane %v188, 1
    %v190 = vadd.f32 %v188, %v189
    %v191 = vmul.f32 %v190, %v181
    %v192 = vld [vmem:[%s3] sm:$0x1]
    %v193 = vadd.f32 %v191, 1e-05
    %v194 = vrsqrt.pop %v193
    %v195 = vmul.f32 %v192, %v194
    %v196 = vld [vmem:[%s4] sm:$0x1]
    %v197 = vmul.f32 %v182, %v195
    %v198 = vsub.f32 %v196, %v197
    %v200 = vlaneseq
    %v201 = vshrl.u32 %v200, 7
    %v202 = vsub.s32 0, %v201
    %v203 = vrot.slane %v195, %v202
    %v205 = vmul.f32 %v174, %v203
    %v207 = vlaneseq
    %v208 = vshrl.u32 %v207, 7
    %v209 = vsub.s32 0, %v208
    %v210 = vrot.slane %v198, %v209
    %v212 = vadd.f32 %v205, %v210
    %213 = vst [vmem:[#allocation2] sm:$0xff] %v212
    // Predicated region
    $region22: #{tpu_custom_call.1} parent=1 // pred_check
      _
    $region23: #{tpu_custom_call.1} parent=1 // pred_check_branch
      %215 = sbr.rel (0) target = $region25
    $region24: #{tpu_custom_call.1} parent=1 // pred_region
      %s217 = ssub.s32 128, 128
      %218 = vsyncadd [#allocation3], %s217
      %s220 = sshll.u32 [#allocation2], 4
      %s221 = int_to_ptr.vmem [resolvable:$true] %s220
      %223 = dma.vmem_to_hbm [thread:$0]  %s221, 128, %s5, [#allocation3]
    $region25: #{tpu_custom_call.1} parent=1 // pred_fallthru
      _
    // Predicated region
    $region26: #{tpu_custom_call.1} parent=1 // pred_check
      _
    $region27: #{tpu_custom_call.1} parent=1 // pred_check_branch
      %225 = sbr.rel (0) target = $region29
    $region28: #{tpu_custom_call.1} parent=1 // pred_region
      %226 = dma.done [#allocation3], 128
    $region29: #{tpu_custom_call.1} parent=1 // pred_fallthru
      _
    %227 = vsyncpa [#allocation3], 1

</llo_original>
